<compile_context>
chip_gen: v5e
topology: v5e:2x2
jax: 0.10.0
libtpu: 0.0.40
codegen_flags: <defaults>
</compile_context>

<pallas_src>
import functools

import jax
import jax.numpy as jnp
import numpy as np
from jax.experimental import pallas as pl
from jax.experimental.pallas import tpu as pltpu


def pam_v6_kernel(x_ref, w_ref, o_ref, *, n_ch, aux0):
    """One batch element per grid step.

    x_ref: (1, Ca, Np) f32. Rows 0..n_ch-1 are x, row n_ch is the masked
           ones-row (1 on valid lanes, 0 on padded lanes), remaining rows 0.
    w_ref: (Cr, Ca) compute-dtype fused weight (see wrapper for row layout).
    o_ref: (1, n_ch, Np) f32 output (padded lanes hold garbage, sliced off
           by the wrapper).
    """
    x = x_ref[0]                                        # (Ca, Np) f32
    w = w_ref[...]                                      # (Cr, Ca) compute dtype

    # Single fused MXU pass: value conv + scaled a_q/b_k rows + mask row.
    # Biases ride on the masked ones-row, so padded lanes come out exactly 0.
    rows = jnp.dot(w, x.astype(w.dtype),
                   preferred_element_type=jnp.float32)  # (Cr, Np) f32

    vt = jnp.tanh(rows[:n_ch])                          # (C, Np); 0 on padded lanes
    b_k = rows[aux0:aux0 + 1]                           # (1, Np), already * gamma/N

    # s/r reductions on the MXU: one (C, Np) x (Np, 8) NT matmul against the
    # aux rows [b_k, a_q, mask, 0...].  Padded lanes contribute 0 on both sides.
    aux = rows[aux0:aux0 + 8].astype(w.dtype)           # (8, Np)
    sr = jax.lax.dot_general(
        vt.astype(w.dtype), aux,
        dimension_numbers=(((1,), (1,)), ((), ())),
        preferred_element_type=jnp.float32)             # (C, 8)
    s = sr[:, 1:2]                                      # sum_i vt * (gamma/N)*a_q[i]
    r = sr[:, 2:3]                                      # sum_{i<N} vt

    # gamma/N already folded into s and b_k; residual added in exact f32.
    o_ref[0] = (s + r * b_k + x[:n_ch]).astype(o_ref.dtype)


def pam_module_v6(x, params, *, compute_dtype=jnp.bfloat16):
    """x: (B, C, H, W) float32 (NCHW, like PyTorch). Returns (B, C, H, W) f32."""
    B, C, H, W = x.shape
    N = H * W
    wq, bq, wk, bk, wv, bv, wcq, wck, gamma = params

    # ---- Fold concat_conv into the query/key 1x1 convs (tiny matmuls in XLA).
    wa = wcq @ wq                        # (1, C)  query row
    ba = (wcq @ bq)[0, 0]                # scalar
    wb = wck @ wk                        # (1, C)  key row
    bb = (wck @ bk)[0, 0]                # scalar
    scale = gamma[0, 0] / float(N)       # fold gamma and 1/N into the aux rows

    # ---- Padded sizes: lanes (N) to 128, channel/sublane dims to 8.
    Np = ((N + 127) // 128) * 128
    Ca = ((C + 1 + 7) // 8) * 8          # x channels + ones-row, sublane aligned
    R0 = ((C + 7) // 8) * 8              # sublane-aligned offset of the aux rows
    Cr = R0 + 8                          # value rows + 8 aux rows

    # ---- Fused weight.  Column C multiplies the masked ones-row of x_aug:
    #   rows[0:C]  = [ wv | bv ]              -> v
    #   row  R0    = scale * [ wb | bb ]      -> scaled b_k
    #   row  R0+1  = scale * [ wa | ba ]      -> scaled a_q
    #   row  R0+2  = mask selector            -> valid-lane mask (1/0)
    w_all = jnp.zeros((Cr, Ca), jnp.float32)
    w_all = w_all.at[:C, :C].set(wv)
    w_all = w_all.at[:C, C].set(bv[:, 0])
    w_all = w_all.at[R0, :C].set(scale * wb[0])
    w_all = w_all.at[R0, C].set(scale * bb)
    w_all = w_all.at[R0 + 1, :C].set(scale * wa[0])
    w_all = w_all.at[R0 + 1, C].set(scale * ba)
    w_all = w_all.at[R0 + 2, C].set(1.0)
    w_all = w_all.astype(compute_dtype)

    # ---- Augmented input: x channels + masked ones-row, zero padded.
    x_aug = jnp.zeros((B, Ca, Np), jnp.float32)
    x_aug = x_aug.at[:, :C, :N].set(x.reshape(B, C, N))
    x_aug = x_aug.at[:, C, :N].set(1.0)

    kernel = functools.partial(pam_v6_kernel, n_ch=C, aux0=R0)

    cost = pl.CostEstimate(
        flops=int(2 * B * Np * (Cr * Ca + 8 * C) + 4 * B * C * Np),
        transcendentals=int(B * C * Np),
        bytes_accessed=int(4 * B * Np * (Ca + C)
                           + Cr * Ca * np.dtype(compute_dtype).itemsize),
    )

    out_flat = pl.pallas_call(
        kernel,
        out_shape=jax.ShapeDtypeStruct((B, C, Np), x.dtype),
        grid_spec=pltpu.PrefetchScalarGridSpec(
            num_scalar_prefetch=0,
            grid=(B,),
            in_specs=[
                pl.BlockSpec((1, Ca, Np), lambda b: (b, 0, 0)),   # x_aug (per batch)
                pl.BlockSpec((Cr, Ca), lambda b: (0, 0)),         # fused weight
            ],
            out_specs=pl.BlockSpec((1, C, Np), lambda b: (b, 0, 0)),
        ),
        compiler_params=pltpu.CompilerParams(
            dimension_semantics=("parallel",),
            vmem_limit_bytes=64 * 1024 * 1024,
        ),
        cost_estimate=cost,
    )(x_aug, w_all)

    return out_flat[:, :, :N].reshape(B, C, H, W)


def pam_module_v6_ref(x, params):
    """Pure-JAX f32 reference matching the (intended) PyTorch forward, unfused."""
    B, C, H, W = x.shape
    N = H * W
    wq, bq, wk, bk, wv, bv, wcq, wck, gamma = params
    xf = x.reshape(B, C, N)
    q = jnp.einsum("ic,bcn->bin", wq, xf) + bq[None]
    k = jnp.einsum("ic,bcn->bin", wk, xf) + bk[None]
    v = jnp.einsum("oc,bcn->bon", wv, xf) + bv[None]
    a_q = jnp.einsum("oi,bin->bon", wcq, q)[:, 0, :]   # (B, N)
    b_k = jnp.einsum("oi,bin->bon", wck, k)[:, 0, :]   # (B, N)
    attn = (a_q[:, :, None] + b_k[:, None, :]) / float(N)
    out = jnp.einsum("bcn,bnm->bcm", jnp.tanh(v), attn)
    out = gamma[0, 0] * out + xf
    return out.reshape(B, C, H, W)


def _make_params(key, C):
    ic = C // 8
    ks = jax.random.split(key, 9)
    wq = jax.random.normal(ks[0], (ic, C), jnp.float32) * 0.1   # query_conv.weight
    bq = jax.random.normal(ks[1], (ic, 1), jnp.float32) * 0.1   # query_conv.bias
    wk = jax.random.normal(ks[2], (ic, C), jnp.float32) * 0.1   # key_conv.weight
    bk = jax.random.normal(ks[3], (ic, 1), jnp.float32) * 0.1   # key_conv.bias
    wv = jax.random.normal(ks[4], (C, C), jnp.float32) * 0.1    # value_conv.weight
    bv = jax.random.normal(ks[5], (C, 1), jnp.float32) * 0.1    # value_conv.bias
    wcq = jax.random.normal(ks[6], (1, ic), jnp.float32) * 0.1  # concat_conv W[:, :ic]
    wck = jax.random.normal(ks[7], (1, ic), jnp.float32) * 0.1  # concat_conv W[:, ic:]
    # PyTorch initializes gamma = 0 (attention path would be a no-op); use a
    # nonzero value so the attention path is actually exercised.
    gamma = jnp.full((1, 1), 0.5, jnp.float32)
    return (wq, bq, wk, bk, wv, bv, wcq, wck, gamma)


if __name__ == "__main__":
    key = jax.random.PRNGKey(0)
    kx, kp = jax.random.split(key)

    # Two small configs: one with N % 128 != 0 (exercises the masked ones-row /
    # lane-padding path) and one lane-aligned.
    for (B, C, H, W) in [(2, 16, 14, 14), (2, 16, 16, 16)]:
        params = _make_params(kp, C)
        x = jax.random.normal(kx, (B, C, H, W), jnp.float32)
        ref = pam_module_v6_ref(x, params)

        # f32 MXU path: tight check of the fused-kernel algebra.
        out_f32 = jax.block_until_ready(
            pam_module_v6(x, params, compute_dtype=jnp.float32))
        assert out_f32.shape == (B, C, H, W) and out_f32.dtype == jnp.float32
        assert np.allclose(np.asarray(out_f32), np.asarray(ref),
                           rtol=1e-4, atol=1e-4), \
            f"f32 mismatch at shape {(B, C, H, W)}"

        # bf16 MXU path (default fast path on v5e/v6e/v7x): the residual is
        # still exact f32, only the small attention term sees bf16 rounding,
        # so a mildly loosened tolerance suffices.
        out_bf16 = jax.block_until_ready(pam_module_v6(x, params))
        assert out_bf16.shape == (B, C, H, W) and out_bf16.dtype == jnp.float32
        assert np.allclose(np.asarray(out_bf16), np.asarray(ref),
                           rtol=5e-3, atol=5e-3), \
            f"bf16 mismatch at shape {(B, C, H, W)}"

    print("KERNEL_OK")
</pallas_src>

<mosaic_0001>
module attributes {stable_mosaic.version = 11 : i64} {
  func.func @pam_v6_kernel(%arg0: i32, %arg1: memref<1x24x256xf32, #tpu.memory_space<vmem>>, %arg2: memref<24x24xf32, #tpu.memory_space<vmem>>, %arg3: memref<1x16x256xf32, #tpu.memory_space<vmem>>) attributes {dimension_semantics = [#tpu.dimension_semantics<parallel>], iteration_bounds = array<i64: 2>, scalar_prefetch = 0 : i64, scratch_operands = 0 : i64, tpu.core_type = #tpu.core_type<tc>, window_params = [{transform_indices = @transform_0, window_bounds = array<i64: 1, 24, 256>}, {pipeline_mode = #tpu.pipeline_mode<synchronous>, transform_indices = @transform_1, window_bounds = array<i64: 24, 24>}, {transform_indices = @transform_2, window_bounds = array<i64: 1, 16, 256>}]} {
    %c0 = arith.constant 0 : index
    %c0_0 = arith.constant 0 : index
    %c0_1 = arith.constant 0 : index
    %0 = vector.load %arg1[%c0, %c0_0, %c0_1] : memref<1x24x256xf32, #tpu.memory_space<vmem>>, vector<1x24x256xf32>
    %1 = vector.shape_cast %0 : vector<1x24x256xf32> to vector<24x256xf32>
    %c0_2 = arith.constant 0 : index
    %c0_3 = arith.constant 0 : index
    %2 = vector.load %arg2[%c0_2, %c0_3] : memref<24x24xf32, #tpu.memory_space<vmem>>, vector<24x24xf32>
    %cst = arith.constant dense<0.000000e+00> : vector<24x256xf32>
    %3 = tpu.matmul %2, %1, %cst {dimension_numbers = #tpu.dot_dimension_numbers<[1], [0], [0], [1], [0, 0, 1, 1], [], []>} : vector<24x24xf32>, vector<24x256xf32>, vector<24x256xf32> -> vector<24x256xf32>
    %4 = vector.extract_strided_slice %3 {offsets = [0, 0], sizes = [16, 256], strides = [1, 1]} : vector<24x256xf32> to vector<16x256xf32>
    %5 = math.tanh %4 : vector<16x256xf32>
    %6 = vector.extract_strided_slice %3 {offsets = [16, 0], sizes = [1, 256], strides = [1, 1]} : vector<24x256xf32> to vector<1x256xf32>
    %7 = vector.extract_strided_slice %3 {offsets = [16, 0], sizes = [8, 256], strides = [1, 1]} : vector<24x256xf32> to vector<8x256xf32>
    %cst_4 = arith.constant dense<0.000000e+00> : vector<16x8xf32>
    %8 = tpu.matmul %5, %7, %cst_4 {dimension_numbers = #tpu.dot_dimension_numbers<[1], [1], [0], [0], [0, 0, 1, 0], [], []>} : vector<16x256xf32>, vector<8x256xf32>, vector<16x8xf32> -> vector<16x8xf32>
    %9 = vector.extract_strided_slice %8 {offsets = [0, 1], sizes = [16, 1], strides = [1, 1]} : vector<16x8xf32> to vector<16x1xf32>
    %10 = vector.extract_strided_slice %8 {offsets = [0, 2], sizes = [16, 1], strides = [1, 1]} : vector<16x8xf32> to vector<16x1xf32>
    %11 = vector.broadcast %10 : vector<16x1xf32> to vector<16x256xf32>
    %12 = vector.broadcast %6 : vector<1x256xf32> to vector<16x256xf32>
    %13 = arith.mulf %11, %12 : vector<16x256xf32>
    %14 = vector.broadcast %9 : vector<16x1xf32> to vector<16x256xf32>
    %15 = arith.addf %14, %13 : vector<16x256xf32>
    %16 = vector.extract_strided_slice %1 {offsets = [0, 0], sizes = [16, 256], strides = [1, 1]} : vector<24x256xf32> to vector<16x256xf32>
    %17 = arith.addf %15, %16 : vector<16x256xf32>
    %c0_5 = arith.constant 0 : index
    %c0_6 = arith.constant 0 : index
    %c0_7 = arith.constant 0 : index
    %18 = vector.load %arg3[%c0_5, %c0_6, %c0_7] : memref<1x16x256xf32, #tpu.memory_space<vmem>>, vector<1x16x256xf32>
    %19 = vector.shape_cast %18 : vector<1x16x256xf32> to vector<16x256xf32>
    %20 = vector.shape_cast %17 : vector<16x256xf32> to vector<1x16x256xf32>
    tpu.vector_store %arg3[%c0_5, %c0_6, %c0_7], %20 {strides = array<i32>} : memref<1x16x256xf32, #tpu.memory_space<vmem>>, vector<1x16x256xf32>,
    return
  }
  func.func @transform_0(%arg0: i32) -> (i32, i32, i32) {
    %c0_i32 = arith.constant 0 : i32
    %c0_i32_0 = arith.constant 0 : i32
    %c0_i32_1 = arith.constant 0 : i32
    return %arg0, %c0_i32, %c0_i32_0 : i32, i32, i32
  }
  func.func @transform_1(%arg0: i32) -> (i32, i32) {
    %c0_i32 = arith.constant 0 : i32
    %c0_i32_0 = arith.constant 0 : i32
    %c0_i32_1 = arith.constant 0 : i32
    return %c0_i32, %c0_i32_0 : i32, i32
  }
  func.func @transform_2(%arg0: i32) -> (i32, i32, i32) {
    %c0_i32 = arith.constant 0 : i32
    %c0_i32_0 = arith.constant 0 : i32
    %c0_i32_1 = arith.constant 0 : i32
    return %arg0, %c0_i32, %c0_i32_0 : i32, i32, i32
  }
}

</mosaic_0001>

<llo_original>
// kernel: tpu_custom_call.1
$region0: #{tpu_custom_call.1}
  #allocation0 [shape = 'u32[]', space=smem, size = 0x4, offset = 0x4, fixed_abs, tag = 'smem constant byte address 0x4 - core index']
  #allocation1 [shape = 'u32[72,128]{1,0:T(1,128)}', space=vmem, size = 0x9000, scoped, tag = 'internal scratch']
  %s0 = inlined_call_operand.hbm [shape: f32[2,24,256], index: 0, kind: input, shape index: {}]
  %s1 = inlined_call_operand.hbm [shape: f32[24,24], index: 1, kind: input, shape index: {}]
  %s2 = inlined_call_operand.hbm [shape: f32[2,16,256], index: 2, kind: output, shape index: {}]
  %s3 = sld [smem:[#allocation0]]
  $region49: #{tpu_custom_call.1} parent=0
    _
  %s5 = ssub.s32 1, %s3
  %s6 = scalar_select 0, %s5, %s3
  $region1: #{tpu_custom_call.1} parent=0
    #allocation2 [shape = 'u8[49152]{0}', space=vmem, size = 0xc000, scoped, tag = 'input window, operand 0']
    #allocation3 [shape = 's32[2]{0}', space=sflag, size = 0x8, scoped, tag = 'scoped memory for tpu_custom_call.1']
    #allocation4 [shape = 's32[2]{0}', space=sflag, size = 0x8, scoped, tag = 'scoped memory for tpu_custom_call.1']
    #allocation5 [shape = 'u8[12288]{0}', space=vmem, size = 0x3000, scoped, tag = 'input window, operand 1, single buffered']
    #allocation6 [shape = 's32[1]{0}', space=sflag, size = 0x4, scoped, tag = 'scoped memory for tpu_custom_call.1']
    #allocation7 [shape = 'u8[32768]{0}', space=vmem, size = 0x8000, scoped, tag = 'output window, operand 0']
    %7 = vsyncpa [#allocation3], 0
    %s8 = scalar_lea.sflag [#allocation3], 1
    %9 = vsyncpa %s8, 0
    %10 = vsyncpa [#allocation6], 0
    %11 = vsyncpa [#allocation4], 0
    %s12 = scalar_lea.sflag [#allocation4], 1
    %13 = vsyncpa %s12, 0
    loop: start=0, step=1, limit=4
    $region2: #{tpu_custom_call.1} parent=1 // loop_pre_header
      _
    $region3: #{tpu_custom_call.1} parent=1 // loop_header
      %s15 = sphi 0, %s19
      %p16 = scmp.ge.s32.totalorder %s15, 4
      %s25 = sphi 0, %s27
      %s28 = sphi 0, %s25
      %s29 = sphi 0, %s28
      %s45 = sphi 0, %s29
      %s49 = sphi 0, %s49
      %s51 = sphi 0, %s49
      %s52 = sphi 0, %s51
      %s66 = sphi 0, %s52
      %s72 = sphi 0, %s74
      %s75 = sphi 0, %s72
      %s76 = sphi 0, %s75
      %s92 = sphi 0, %s76
    $region4: #{tpu_custom_call.1} parent=1 // loop_header_branch
      %18 = sbr.rel (%p16) target = $region8
    $region5: #{tpu_custom_call.1} parent=1 // loop_body
      %s20 = ssub.s32 %s15, 1
      %s21 = ssub.s32 %s15, 2
      %s22 = sadd.s32 %s15, 1
      %s23 = ssub.s32 %s15, %s22
      %p24 = scmp.eq.s32.totalorder %s23, 0
      %s26 = sadd.s32 %s25, 1
      %s27 = scalar_select %p24, %s25, %s26
      %p30 = pneg %p24
      %p31 = scmp.eq.s32.totalorder %s15, 1
      %p32 = por %p30, %p31
      %p33 = scmp.ne.s32.totalorder %s25, %s28
      %p34 = scmp.eq.s32.totalorder %s15, 0
      %p35 = por %p33, %p34
      %p36 = scmp.ne.s32.totalorder %s25, %s28
      %p37 = scmp.eq.s32.totalorder %s20, 1
      %p38 = por %p36, %p37
      %p39 = scmp.ne.s32.totalorder %s28, %s29
      %p40 = scmp.eq.s32.totalorder %s20, 0
      %p41 = por %p39, %p40
      %p42 = scmp.ne.s32.totalorder %s28, %s29
      %p43 = scmp.eq.s32.totalorder %s21, 1
      %p44 = por %p42, %p43
      %p46 = scmp.ne.s32.totalorder %s29, %s45
      %p47 = scmp.eq.s32.totalorder %s21, 0
      %p48 = por %p46, %p47
      %s50 = sadd.s32 %s49, 1
      %p53 = scmp.eq.s32.totalorder %s15, 1
      %p54 = scmp.ne.s32.totalorder %s49, %s51
      %p55 = scmp.eq.s32.totalorder %s15, 0
      %p56 = por %p54, %p55
      %p57 = scmp.ne.s32.totalorder %s49, %s51
      %p58 = scmp.eq.s32.totalorder %s20, 1
      %p59 = por %p57, %p58
      %p60 = scmp.ne.s32.totalorder %s51, %s52
      %p61 = scmp.eq.s32.totalorder %s20, 0
      %p62 = por %p60, %p61
      %p63 = scmp.ne.s32.totalorder %s51, %s52
      %p64 = scmp.eq.s32.totalorder %s21, 1
      %p65 = por %p63, %p64
      %p67 = scmp.ne.s32.totalorder %s52, %s66
      %p68 = scmp.eq.s32.totalorder %s21, 0
      %p69 = por %p67, %p68
      %s70 = ssub.s32 %s15, %s22
      %p71 = scmp.eq.s32.totalorder %s70, 0
      %s73 = sadd.s32 %s72, 1
      %s74 = scalar_select %p71, %s72, %s73
      %p77 = pneg %p71
      %p78 = scmp.eq.s32.totalorder %s15, 1
      %p79 = por %p77, %p78
      %p80 = scmp.ne.s32.totalorder %s72, %s75
      %p81 = scmp.eq.s32.totalorder %s15, 0
      %p82 = por %p80, %p81
      %p83 = scmp.ne.s32.totalorder %s72, %s75
      %p84 = scmp.eq.s32.totalorder %s20, 1
      %p85 = por %p83, %p84
      %p86 = scmp.ne.s32.totalorder %s75, %s76
      %p87 = scmp.eq.s32.totalorder %s20, 0
      %p88 = por %p86, %p87
      %p89 = scmp.ne.s32.totalorder %s75, %s76
      %p90 = scmp.eq.s32.totalorder %s21, 1
      %p91 = por %p89, %p90
      %p93 = scmp.ne.s32.totalorder %s76, %s92
      %p94 = scmp.eq.s32.totalorder %s21, 0
      %p95 = por %p93, %p94
      %p96 = scmp.le.s32.totalorder 1, %s15
      %p97 = scmp.lt.s32.totalorder %s15, 3
      %p98 = pnand %p96, %p97
      %p99 = pneg %p98
      // Predicated region
      $region9: #{tpu_custom_call.1} parent=5 // pred_check
        _
      $region10: #{tpu_custom_call.1} parent=5 // pred_check_branch
        %101 = sbr.rel (%p98) target = $region12
      $region11: #{tpu_custom_call.1} parent=5 // pred_region
        %s102 = ssub.s32 %s15, 1
        // Predicated region
        $region13: #{tpu_custom_call.1} parent=11 // pred_check
          %p103 = pneg %p62
        $region14: #{tpu_custom_call.1} parent=11 // pred_check_branch
          %105 = sbr.rel (%p103) target = $region16
        $region15: #{tpu_custom_call.1} parent=11 // pred_region
          %107 = vsyncadd [#allocation6], 0
          %s108 = sshll.u32 %s1, 4
          %s109 = int_to_ptr.hbm [resolvable:$true] %s108
          %s110 = sshll.u32 [#allocation5], 4
          %s111 = int_to_ptr.vmem [resolvable:$true] %s110
          %116 = dma.hbm_to_vmem [thread:$0]  %s109, 384, %s111, [#allocation6], 128, 128, 8
        $region16: #{tpu_custom_call.1} parent=11 // pred_fallthru
          _
      $region12: #{tpu_custom_call.1} parent=5 // pred_fallthru
        _
      %p117 = scmp.lt.s32.totalorder %s15, 2
      // Predicated region
      $region17: #{tpu_custom_call.1} parent=5 // pred_check
        %p118 = pneg %p117
      $region18: #{tpu_custom_call.1} parent=5 // pred_check_branch
        %120 = sbr.rel (%p118) target = $region20
      $region19: #{tpu_custom_call.1} parent=5 // pred_region
        // Predicated region
        $region21: #{tpu_custom_call.1} parent=19 // pred_check
          %p121 = pneg %p35
        $region22: #{tpu_custom_call.1} parent=19 // pred_check_branch
          %123 = sbr.rel (%p121) target = $region24
        $region23: #{tpu_custom_call.1} parent=19 // pred_region
          %s124 = sand.u32 %s25, 1
          %s125 = scalar_lea.sflag [#allocation3], %s124
          %s126 = sand.u32 %s25, 1
          %s127 = smul.addr %s126, 48
          %s128 = scalar_lea.vmem [#allocation2], %s127
          %130 = vsyncadd %s125, 0
          %s131 = smul.addr %s15, 6
          %s132 = smul.addr %s131, 8
          %s133 = scalar_lea.hbm %s0, %s132
          %s134 = sshll.u32 %s133, 4
          %s135 = int_to_ptr.hbm [resolvable:$true] %s134
          %s136 = sshll.u32 %s128, 4
          %s137 = int_to_ptr.vmem [resolvable:$true] %s136
          %142 = dma.hbm_to_vmem [thread:$0]  %s135, 768, %s137, %s125, 256, 256, 16
        $region24: #{tpu_custom_call.1} parent=19 // pred_fallthru
          _
      $region20: #{tpu_custom_call.1} parent=5 // pred_fallthru
        _
      %p143 = scmp.le.s32.totalorder 1, %s15
      %p144 = scmp.lt.s32.totalorder %s15, 3
      %p145 = pnand %p143, %p144
      %p146 = pneg %p145
      // Predicated region
      $region25: #{tpu_custom_call.1} parent=5 // pred_check
        _
      $region26: #{tpu_custom_call.1} parent=5 // pred_check_branch
        %148 = sbr.rel (%p145) target = $region28
      $region27: #{tpu_custom_call.1} parent=5 // pred_region
        %s149 = ssub.s32 %s15, 1
        %s150 = sand.u32 %s28, 1
        %s151 = scalar_lea.sflag [#allocation3], %s150
        %s152 = sand.u32 %s28, 1
        %s153 = smul.addr %s152, 48
        %s154 = scalar_lea.vmem [#allocation2], %s153
        // Predicated region
        $region29: #{tpu_custom_call.1} parent=27 // pred_check
          %p155 = pneg %p41
        $region30: #{tpu_custom_call.1} parent=27 // pred_check_branch
          %157 = sbr.rel (%p155) target = $region32
        $region31: #{tpu_custom_call.1} parent=27 // pred_region
          %159 = dma.done %s151, 768
        $region32: #{tpu_custom_call.1} parent=27 // pred_fallthru
          _
        // Predicated region
        $region33: #{tpu_custom_call.1} parent=27 // pred_check
          %p160 = pneg %p62
        $region34: #{tpu_custom_call.1} parent=27 // pred_check_branch
          %162 = sbr.rel (%p160) target = $region36
        $region35: #{tpu_custom_call.1} parent=27 // pred_region
          %164 = dma.done [#allocation6], 384
        $region36: #{tpu_custom_call.1} parent=27 // pred_fallthru
          _
        %s165 = sand.u32 %s28, 1
        %s166 = scalar_lea.sflag [#allocation3], %s165
        %s167 = sand.u32 %s28, 1
        %s168 = smul.addr %s167, 48
        %s169 = scalar_lea.vmem [#allocation2], %s168
        %p170 = pneg %p41
        %p171 = pneg %p38
        %p172 = pneg %p62
        %p173 = pneg %p59
        %p174 = pneg %p88
        %p175 = pneg %p85
        %s176 = sand.u32 %s75, 1
        %s177 = scalar_lea.sflag [#allocation4], %s176
        %s178 = sand.u32 %s75, 1
        %s179 = smul.addr %s178, 32
        %s180 = scalar_lea.vmem [#allocation7], %s179
        %v181 = vld [vmem:[%s154] sm:$0xff]
        %v182 = vld [vmem:[%s154 + $0x8] sm:$0xff]
        %v183 = vld [vmem:[%s154 + $0x10] sm:$0xff]
        %v184 = vld [vmem:[%s154 + $0x18] sm:$0xff]
        %v185 = vld [vmem:[%s154 + $0x20] sm:$0xff]
        %v186 = vld [vmem:[%s154 + $0x28] sm:$0xff]
        %v187 = vld [vmem:[#allocation5] sm:$0xff]
        %v188 = vld [vmem:[#allocation5 + $0x8] sm:$0xff]
        %v189 = vld [vmem:[#allocation5 + $0x10] sm:$0xff]
        %vm190 = vcmask 195584
        %v192 = vsel %vm190, %v187, 0
        %v195 = vsel %vm190, %v188, 0
        %v198 = vsel %vm190, %v189, 0
        %200 = vmatpush.msra.mxu0 0.0
        %201 = vmatpush.msra.mxu0 0.0
        %202 = vmatpush.msra.mxu0 0.0
        %203 = vmatpush.msra.mxu0 0.0
        %204 = vmatpush.msra.mxu0 0.0
        %205 = vmatpush.msra.mxu0 0.0
        %206 = vmatpush.msra.mxu0 0.0
        %207 = vmatpush.msra.mxu0 0.0
        %208 = vmatpush.msra.mxu0 0.0
        %209 = vmatpush.msra.mxu0 0.0
        %210 = vmatpush.msra.mxu0 0.0
        %211 = vmatpush.msra.mxu0 0.0
        %212 = vmatpush.msra.mxu0 0.0
        %213 = vmatpush.msra.mxu0 %v185
        %214 = vmatpush.msra.mxu0 %v183
        %215 = vmatpush.msra.mxu0 %v181
        %216 = vmatmul.f32.gmra.mxu0 %v192
        %v217 = vpop.f32.mrf.mxu0
        %v218 = vadd.f32 0.0, %v217
        %219 = vmatmul.f32.gmra.mxu0 %v195
        %v220 = vpop.f32.mrf.mxu0
        %v221 = vadd.f32 0.0, %v220
        %222 = vmatmul.f32.gmra.mxu0 %v198
        %v223 = vpop.f32.mrf.mxu0
        %v224 = vadd.f32 0.0, %v223
        %225 = vdwg.mxu0
        %226 = vmatpush.msra.mxu0 0.0
        %227 = vmatpush.msra.mxu0 0.0
        %228 = vmatpush.msra.mxu0 0.0
        %229 = vmatpush.msra.mxu0 0.0
        %230 = vmatpush.msra.mxu0 0.0
        %231 = vmatpush.msra.mxu0 0.0
        %232 = vmatpush.msra.mxu0 0.0
        %233 = vmatpush.msra.mxu0 0.0
        %234 = vmatpush.msra.mxu0 0.0
        %235 = vmatpush.msra.mxu0 0.0
        %236 = vmatpush.msra.mxu0 0.0
        %237 = vmatpush.msra.mxu0 0.0
        %238 = vmatpush.msra.mxu0 0.0
        %239 = vmatpush.msra.mxu0 %v186
        %240 = vmatpush.msra.mxu0 %v184
        %241 = vmatpush.msra.mxu0 %v182
        %242 = vmatmul.f32.gmra.mxu0 %v192
        %v243 = vpop.f32.mrf.mxu0
        %v244 = vadd.f32 0.0, %v243
        %245 = vmatmul.f32.gmra.mxu0 %v195
        %v246 = vpop.f32.mrf.mxu0
        %v247 = vadd.f32 0.0, %v246
        %248 = vmatmul.f32.gmra.mxu0 %v198
        %v249 = vpop.f32.mrf.mxu0
        %v250 = vadd.f32 0.0, %v249
        %251 = vdwg.mxu0
        %v252 = vtanh.pop %v218
        %v253 = vtanh.pop %v244
        %v254 = vtanh.pop %v221
        %v255 = vtanh.pop %v247
        %256 = vmatpush.xpose.msra.mxu0 0.0
        %257 = vmatpush.xpose.msra.mxu0 0.0
        %258 = vmatpush.xpose.msra.mxu0 0.0
        %259 = vmatpush.xpose.msra.mxu0 0.0
        %260 = vmatpush.xpose.msra.mxu0 0.0
        %261 = vmatpush.xpose.msra.mxu0 0.0
        %262 = vmatpush.xpose.msra.mxu0 0.0
        %263 = vmatpush.xpose.msra.mxu0 0.0
        %264 = vmatpush.xpose.msra.mxu0 0.0
        %265 = vmatpush.xpose.msra.mxu0 0.0
        %266 = vmatpush.xpose.msra.mxu0 0.0
        %267 = vmatpush.xpose.msra.mxu0 0.0
        %268 = vmatpush.xpose.msra.mxu0 0.0
        %269 = vmatpush.xpose.msra.mxu0 0.0
        %270 = vmatpush.xpose.msra.mxu0 0.0
        %271 = vmatpush.xpose.msra.mxu0 %v224
        %272 = vmatmul.f32.gmra.mxu0 %v252
        %v273 = vpop.f32.mrf.mxu0
        %v274 = vadd.f32 0.0, %v273
        %275 = vmatmul.f32.gmra.mxu0 %v254
        %v276 = vpop.f32.mrf.mxu0
        %v277 = vadd.f32 0.0, %v276
        %278 = vdwg.mxu0
        %279 = vmatpush.xpose.msra.mxu0 0.0
        %280 = vmatpush.xpose.msra.mxu0 0.0
        %281 = vmatpush.xpose.msra.mxu0 0.0
        %282 = vmatpush.xpose.msra.mxu0 0.0
        %283 = vmatpush.xpose.msra.mxu0 0.0
        %284 = vmatpush.xpose.msra.mxu0 0.0
        %285 = vmatpush.xpose.msra.mxu0 0.0
        %286 = vmatpush.xpose.msra.mxu0 0.0
        %287 = vmatpush.xpose.msra.mxu0 0.0
        %288 = vmatpush.xpose.msra.mxu0 0.0
        %289 = vmatpush.xpose.msra.mxu0 0.0
        %290 = vmatpush.xpose.msra.mxu0 0.0
        %291 = vmatpush.xpose.msra.mxu0 0.0
        %292 = vmatpush.xpose.msra.mxu0 0.0
        %293 = vmatpush.xpose.msra.mxu0 0.0
        %294 = vmatpush.xpose.msra.mxu0 %v250
        %295 = vmatmul.f32.gmra.mxu0 %v253
        %v296 = vpop.f32.mrf.mxu0
        %v297 = vadd.f32 %v274, %v296
        %298 = vmatmul.f32.gmra.mxu0 %v255
        %v299 = vpop.f32.mrf.mxu0
        %v300 = vadd.f32 %v277, %v299
        %301 = vdwg.mxu0
        %303 = vset.pattern.permute.xlu0 2
        %304 = vperm.xlu0 %303, %v297
        %v305 = vpop.permute.xlu0 %304
        %308 = vset.pattern.permute.xlu0 2
        %309 = vperm.xlu0 %308, %v300
        %v310 = vpop.permute.xlu0 %309
        %v312 = vperm.slane %v224, 0
        %v313 = vperm.slane %v250, 0
        %v314 = vmul.f32 %v305, %v312
        %v315 = vmul.f32 %v305, %v313
        %v316 = vmul.f32 %v310, %v312
        %v317 = vmul.f32 %v310, %v313
        %318 = vset.pattern.permute.xlu0 1
        %319 = vperm.xlu0 %318, %v297
        %v320 = vpop.permute.xlu0 %319
        %322 = vset.pattern.permute.xlu0 1
        %323 = vperm.xlu0 %322, %v300
        %v324 = vpop.permute.xlu0 %323
        %v326 = vadd.f32 %v320, %v314
        %v327 = vadd.f32 %v320, %v315
        %v328 = vadd.f32 %v324, %v316
        %v329 = vadd.f32 %v324, %v317
        %v330 = vadd.f32 %v326, %v181
        %v331 = vadd.f32 %v327, %v182
        %v332 = vadd.f32 %v328, %v183
        %v333 = vadd.f32 %v329, %v184
        %334 = vst [vmem:[%s180] sm:$0xff] %v330
        %335 = vst [vmem:[%s180 + $0x8] sm:$0xff] %v331
        %336 = vst [vmem:[%s180 + $0x10] sm:$0xff] %v332
        %337 = vst [vmem:[%s180 + $0x18] sm:$0xff] %v333
        %s338 = sand.u32 %s75, 1
        %s339 = scalar_lea.sflag [#allocation4], %s338
        %s340 = sand.u32 %s75, 1
        %s341 = smul.addr %s340, 32
        %s342 = scalar_lea.vmem [#allocation7], %s341
        // Predicated region
        $region37: #{tpu_custom_call.1} parent=27 // pred_check
          %p343 = pneg %p85
        $region38: #{tpu_custom_call.1} parent=27 // pred_check_branch
          %345 = sbr.rel (%p343) target = $region40
        $region39: #{tpu_custom_call.1} parent=27 // pred_region
          %347 = vsyncadd %s339, 0
          %s348 = smul.addr %s20, 4
          %s349 = smul.addr %s348, 8
          %s350 = scalar_lea.hbm %s2, %s349
          %s351 = sshll.u32 %s342, 4
          %s352 = int_to_ptr.vmem [resolvable:$true] %s351
          %s353 = sshll.u32 %s350, 4
          %s354 = int_to_ptr.hbm [resolvable:$true] %s353
          %359 = dma.vmem_to_hbm [thread:$0]  %s352, 512, %s354, %s339, 256, 256, 16
        $region40: #{tpu_custom_call.1} parent=27 // pred_fallthru
          _
      $region28: #{tpu_custom_call.1} parent=5 // pred_fallthru
        _
      %p360 = scmp.le.s32.totalorder 2, %s15
      // Predicated region
      $region41: #{tpu_custom_call.1} parent=5 // pred_check
        %p361 = pneg %p360
      $region42: #{tpu_custom_call.1} parent=5 // pred_check_branch
        %363 = sbr.rel (%p361) target = $region44
      $region43: #{tpu_custom_call.1} parent=5 // pred_region
        %s364 = ssub.s32 %s15, 2
        // Predicated region
        $region45: #{tpu_custom_call.1} parent=43 // pred_check
          %p365 = pneg %p91
        $region46: #{tpu_custom_call.1} parent=43 // pred_check_branch
          %367 = sbr.rel (%p365) target = $region48
        $region47: #{tpu_custom_call.1} parent=43 // pred_region
          %s368 = sand.u32 %s76, 1
          %s369 = scalar_lea.sflag [#allocation4], %s368
          %s370 = sand.u32 %s76, 1
          %s371 = smul.addr %s370, 32
          %s372 = scalar_lea.vmem [#allocation7], %s371
          %374 = dma.done %s369, 512
        $region48: #{tpu_custom_call.1} parent=43 // pred_fallthru
          _
      $region44: #{tpu_custom_call.1} parent=5 // pred_fallthru
        _
    $region6: #{tpu_custom_call.1} parent=1 // loop_footer
      %s19 = sadd.s32 1, %s15
    $region7: #{tpu_custom_call.1} parent=1 // loop_footer_branch
      %14 = sbr.rel target = $region3
    $region8: #{tpu_custom_call.1} parent=1 // loop_exit
      _
    %375 = vsyncpa [#allocation3], 1
    %s376 = scalar_lea.sflag [#allocation3], 1
    %377 = vsyncpa %s376, 1
    %378 = vsyncpa [#allocation6], 1
    %379 = vsyncpa [#allocation4], 1
    %s380 = scalar_lea.sflag [#allocation4], 1
    %381 = vsyncpa %s380, 1

</llo_original>
